<compile_context>
chip_gen: v6e
topology: v6e:2x2x1
jax: 0.10.0
libtpu: 0.0.40
codegen_flags: <defaults>
</compile_context>

<pallas_src>
import functools

import jax
import jax.numpy as jnp
from jax.experimental import pallas as pl
from jax.experimental.pallas import tpu as pltpu


def _lora_kernel(w_ref, b_ref, a_ref, o_ref, *, scale, mxu_bf16):
    # Scale the small (rank, tn) A slab rather than the (tm, tn) delta.
    a = a_ref[...].astype(jnp.float32) * scale
    b = b_ref[...]
    if mxu_bf16:
        # bf16 operands avoid the f32 multi-pass on the MXU (critical on
        # v7x); accumulation stays f32 via preferred_element_type.
        a = a.astype(jnp.bfloat16)
        b = b.astype(jnp.bfloat16)
    delta = jnp.dot(b, a, preferred_element_type=jnp.float32)
    o_ref[...] = (w_ref[...].astype(jnp.float32) + delta).astype(o_ref.dtype)


def _sublane_multiple(dtype):
    # f32 -> 8 sublanes, bf16/f16 -> 16 (sublane packing granularity).
    return {2: 16, 4: 8}.get(jnp.dtype(dtype).itemsize, 8)


def _device_info():
    """(vmem_capacity_bytes, num_tensorcores) with conservative fallbacks."""
    vmem_cap = 64 * 1024 * 1024  # conservative default (v7x-sized VMEM)
    num_tc = 1
    try:
        info = pltpu.get_tpu_info()
        vmem_cap = int(getattr(info, "vmem_capacity_bytes", vmem_cap))
    except Exception:
        pass
    try:
        kind = jax.devices()[0].device_kind.lower()
        if "v7" in kind:
            num_tc = 2
    except Exception:
        pass
    return vmem_cap, num_tc


def _round_up(x, m):
    return ((x + m - 1) // m) * m


def _vmem_budget_bytes(tm, tn, r, itemsize, vmem_cap):
    """Scoped-VMEM limit from the actual footprint (+headroom), < physical."""
    tile = tm * tn
    footprint = (
        2 * 2 * tile * itemsize              # double-buffered W-in + out tiles
        + 2 * (tm * r + r * tn) * itemsize   # double-buffered B / A slabs
        + 2 * tile * 4                       # f32 delta + f32-cast W intermediates
    )
    budget = int(footprint * 1.5) + (4 << 20)   # Mosaic internal scratch headroom
    budget = max(budget, 32 << 20)
    budget = min(budget, vmem_cap - (8 << 20))
    return budget


def lora_forward(original_weights, lora_A, lora_B, *, alpha, rank,
                 enabled=True, tm=None, tn=None, alias_weights=False,
                 mxu_bf16=True):
    """Pallas implementation of LoRAParametrization.forward."""
    if not enabled:
        return original_weights

    if not jnp.issubdtype(jnp.dtype(original_weights.dtype), jnp.floating):
        raise ValueError("lora_forward only supports floating weight dtypes; "
                         "quantized weight merge needs a dequant/requant path.")

    scale = float(alpha) / float(rank)

    features_in, r = lora_B.shape
    r2, features_out = lora_A.shape
    assert r == r2 == rank, "lora_A/lora_B rank mismatch"
    orig_shape = original_weights.shape
    assert features_in * features_out == original_weights.size, \
        "lora_B @ lora_A must have as many elements as the weight"

    # Flatten W to the (features_in, features_out) matmul layout (row-major,
    # matches torch .view()).
    W2d = original_weights.reshape(features_in, features_out)
    M, N = W2d.shape
    itemsize = jnp.dtype(W2d.dtype).itemsize
    sub = _sublane_multiple(W2d.dtype)

    vmem_cap, num_tc = _device_info()

    # Per-generation tile targets: bigger tiles on 128-MiB-VMEM parts
    # (v5e/v6e) to amortize the ~0.35us/step grid overhead; the smaller
    # 512x2048 configuration on 64-MiB v7x.  tn (lane width) gets priority.
    if tm is None or tn is None:
        if vmem_cap >= (100 << 20):
            tm_target, tn_target = 512, 4096
        else:
            tm_target, tn_target = 512, 2048
        tm = tm_target if tm is None else tm
        tn = tn_target if tn is None else tn

    # Fixed (sublane,128)-aligned tiles with a cdiv grid; ragged edge blocks
    # are masked by Pallas, so no full-extent fallback can blow VMEM.
    tm = M if M <= tm else tm
    tn = N if N <= tn else tn

    grid_i = pl.cdiv(M, tm)
    grid_j = pl.cdiv(N, tn)

    # v7x has 2 TensorCores: only when the whole parallel grid is a single
    # step (and the part actually has 2 TCs), split the sublane axis so both
    # cores get work.  Keep tn lane-dense; never fires on single-TC v5e/v6e.
    if num_tc >= 2 and grid_i == 1 and grid_j == 1 and M > sub:
        tm_half = _round_up((M + 1) // 2, sub)
        if tm_half < M:
            tm = tm_half
            grid_i = pl.cdiv(M, tm)

    grid = (grid_i, grid_j)
    vmem_limit = _vmem_budget_bytes(tm, tn, r, itemsize, vmem_cap)

    out2d = pl.pallas_call(
        functools.partial(_lora_kernel, scale=scale, mxu_bf16=mxu_bf16),
        out_shape=jax.ShapeDtypeStruct((M, N), W2d.dtype),
        grid_spec=pltpu.PrefetchScalarGridSpec(
            num_scalar_prefetch=0,
            grid=grid,
            in_specs=[
                pl.BlockSpec((tm, tn), lambda i, j: (i, j)),   # W tile (streamed)
                pl.BlockSpec((tm, r), lambda i, j: (i, 0)),    # lora_B rows (const over j)
                pl.BlockSpec((r, tn), lambda i, j: (0, j)),    # lora_A cols (tiny slab)
            ],
            out_specs=pl.BlockSpec((tm, tn), lambda i, j: (i, j)),
        ),
        compiler_params=pltpu.CompilerParams(
            dimension_semantics=("parallel", "parallel"),
            vmem_limit_bytes=vmem_limit,
        ),
        cost_estimate=pl.CostEstimate(
            flops=2 * M * N * r,
            transcendentals=0,
            bytes_accessed=2 * M * N * itemsize + (M * r + r * N) * itemsize,
        ),
        # Optional LoRA-merge-in-place: reuse W's HBM buffer for the output.
        input_output_aliases=({0: 0} if alias_weights else {}),
    )(W2d, lora_B, lora_A)

    return out2d.reshape(orig_shape)


if __name__ == "__main__":
    # Small, deterministic setup consistent with the module's __init__.
    features_in, features_out = 256, 128
    rank, alpha = 4, 4

    key = jax.random.PRNGKey(0)
    k_w, k_a, k_b, k_w2, k_w3 = jax.random.split(key, 5)

    # Original weight being parametrized (e.g. a Linear weight).
    W = jax.random.normal(k_w, (features_in, features_out), dtype=jnp.float32)

    # Module init: lora_A ~ N(0, 1), lora_B = zeros.
    lora_A = jax.random.normal(k_a, (rank, features_out), dtype=jnp.float32)
    lora_B = jnp.zeros((features_in, rank), dtype=jnp.float32)

    out = jax.block_until_ready(
        lora_forward(W, lora_A, lora_B, alpha=alpha, rank=rank))

    # Check 1: with zero-initialized lora_B, output == W (delta is exactly 0).
    ref = W + (lora_B @ lora_A).reshape(W.shape) * (alpha / rank)
    assert jnp.allclose(out, ref, atol=1e-5, rtol=1e-5)

    # Check 2: non-trivial lora_B exercises the (bf16-operand) MXU path.
    lora_B_nz = jax.random.normal(k_b, (features_in, rank), dtype=jnp.float32)
    out_nz = jax.block_until_ready(
        lora_forward(W, lora_A, lora_B_nz, alpha=alpha, rank=rank))
    ref_nz = W + (lora_B_nz @ lora_A).reshape(W.shape) * (alpha / rank)
    assert jnp.allclose(out_nz, ref_nz, atol=5e-2, rtol=1e-2)

    # Check 3: non-2D weight (conv-like), exercising the .view() reshape path.
    fi2, fo2 = 64, 64
    W_conv = jax.random.normal(k_w2, (8, 4, 16, 8), dtype=jnp.float32)  # numel 4096 = 64*64
    A2 = jax.random.normal(k_a, (rank, fo2), dtype=jnp.float32)
    B2 = jax.random.normal(k_b, (fi2, rank), dtype=jnp.float32)
    out_c = jax.block_until_ready(
        lora_forward(W_conv, A2, B2, alpha=alpha, rank=rank))
    ref_c = W_conv + (B2 @ A2).reshape(W_conv.shape) * (alpha / rank)
    assert jnp.allclose(out_c, ref_c, atol=5e-2, rtol=1e-2)

    # Check 4: ragged dims + small tile override exercises the cdiv grid with
    # masked edge blocks (grid = (2, 3), neither axis divides evenly).
    fi3, fo3 = 200, 300
    W_rag = jax.random.normal(k_w3, (fi3, fo3), dtype=jnp.float32)
    A3 = jax.random.normal(k_a, (rank, fo3), dtype=jnp.float32)
    B3 = jax.random.normal(k_b, (fi3, rank), dtype=jnp.float32)
    out_r = jax.block_until_ready(
        lora_forward(W_rag, A3, B3, alpha=alpha, rank=rank, tm=128, tn=128))
    ref_r = W_rag + (B3 @ A3).reshape(W_rag.shape) * (alpha / rank)
    assert jnp.allclose(out_r, ref_r, atol=5e-2, rtol=1e-2)

    # Check 5: enabled=False pass-through.
    out_off = lora_forward(W, lora_A, lora_B_nz, alpha=alpha, rank=rank,
                           enabled=False)
    assert jnp.array_equal(out_off, W)

    print("KERNEL_OK")
</pallas_src>

<mosaic_0001>
module attributes {stable_mosaic.version = 11 : i64} {
  func.func @_lora_kernel(%arg0: i32, %arg1: i32, %arg2: memref<256x128xf32, #tpu.memory_space<vmem>>, %arg3: memref<256x4xf32, #tpu.memory_space<vmem>>, %arg4: memref<4x128xf32, #tpu.memory_space<vmem>>, %arg5: memref<256x128xf32, #tpu.memory_space<vmem>>) attributes {dimension_semantics = [#tpu.dimension_semantics<parallel>, #tpu.dimension_semantics<parallel>], iteration_bounds = array<i64: 1, 1>, scalar_prefetch = 0 : i64, scratch_operands = 0 : i64, tpu.core_type = #tpu.core_type<tc>, window_params = [{transform_indices = @transform_0, window_bounds = array<i64: 256, 128>}, {transform_indices = @transform_1, window_bounds = array<i64: 256, 4>}, {transform_indices = @transform_2, window_bounds = array<i64: 4, 128>}, {transform_indices = @transform_3, window_bounds = array<i64: 256, 128>}]} {
    %c0 = arith.constant 0 : index
    %c0_0 = arith.constant 0 : index
    %0 = vector.load %arg4[%c0, %c0_0] : memref<4x128xf32, #tpu.memory_space<vmem>>, vector<4x128xf32>
    %cst = arith.constant 1.000000e+00 : f32
    %1 = vector.broadcast %cst : f32 to vector<4x128xf32>
    %2 = arith.mulf %0, %1 : vector<4x128xf32>
    %c0_1 = arith.constant 0 : index
    %c0_2 = arith.constant 0 : index
    %3 = vector.load %arg3[%c0_1, %c0_2] : memref<256x4xf32, #tpu.memory_space<vmem>>, vector<256x4xf32>
    %4 = arith.truncf %2 : vector<4x128xf32> to vector<4x128xbf16>
    %5 = arith.truncf %3 : vector<256x4xf32> to vector<256x4xbf16>
    %cst_3 = arith.constant dense<0.000000e+00> : vector<256x128xf32>
    %6 = tpu.matmul %5, %4, %cst_3 {dimension_numbers = #tpu.dot_dimension_numbers<[1], [0], [0], [1], [0, 0, 1, 1], [], []>} : vector<256x4xbf16>, vector<4x128xbf16>, vector<256x128xf32> -> vector<256x128xf32>
    %c0_4 = arith.constant 0 : index
    %c0_5 = arith.constant 0 : index
    %7 = vector.load %arg2[%c0_4, %c0_5] : memref<256x128xf32, #tpu.memory_space<vmem>>, vector<256x128xf32>
    %8 = arith.addf %7, %6 : vector<256x128xf32>
    %c0_6 = arith.constant 0 : index
    %c0_7 = arith.constant 0 : index
    %9 = vector.load %arg5[%c0_6, %c0_7] : memref<256x128xf32, #tpu.memory_space<vmem>>, vector<256x128xf32>
    tpu.vector_store %arg5[%c0_6, %c0_7], %8 {strides = array<i32>} : memref<256x128xf32, #tpu.memory_space<vmem>>, vector<256x128xf32>,
    return
  }
  func.func @transform_0(%arg0: i32, %arg1: i32) -> (i32, i32) {
    %c0_i32 = arith.constant 0 : i32
    return %arg0, %arg1 : i32, i32
  }
  func.func @transform_1(%arg0: i32, %arg1: i32) -> (i32, i32) {
    %c0_i32 = arith.constant 0 : i32
    %c0_i32_0 = arith.constant 0 : i32
    return %arg0, %c0_i32 : i32, i32
  }
  func.func @transform_2(%arg0: i32, %arg1: i32) -> (i32, i32) {
    %c0_i32 = arith.constant 0 : i32
    %c0_i32_0 = arith.constant 0 : i32
    return %c0_i32, %arg1 : i32, i32
  }
  func.func @transform_3(%arg0: i32, %arg1: i32) -> (i32, i32) {
    %c0_i32 = arith.constant 0 : i32
    return %arg0, %arg1 : i32, i32
  }
}

</mosaic_0001>

<llo_original>
// kernel: tpu_custom_call.1
$region0: #{tpu_custom_call.1}
  #allocation0 [shape = 'u32[]', space=smem, size = 0x4, offset = 0x4, fixed_abs, tag = 'smem constant byte address 0x4 - core index']
  #allocation1 [shape = 'u32[144,128]{1,0:T(1,128)}', space=vmem, size = 0x12000, scoped, tag = 'internal scratch']
  %s0 = inlined_call_operand.vmem [shape: f32[256,128], index: 0, kind: input, shape index: {}]
  %s1 = inlined_call_operand.vmem [shape: f32[256,4], index: 1, kind: input, shape index: {}]
  %s2 = inlined_call_operand.vmem [shape: f32[4,128], index: 2, kind: input, shape index: {}]
  %s3 = inlined_call_operand.hbm [shape: f32[256,128], index: 3, kind: output, shape index: {}]
  %s4 = sld [smem:[#allocation0]]
  $region22: #{tpu_custom_call.1} parent=0
    _
  %s6 = ssub.s32 1, %s4
  %s7 = scalar_select 0, %s6, %s4
  $region1: #{tpu_custom_call.1} parent=0
    #allocation2 [shape = 'u8[131072]{0}', space=vmem, size = 0x20000, scoped, tag = 'output window, operand 0, single buffered']
    #allocation3 [shape = 's32[1]{0}', space=sflag, size = 0x4, scoped, tag = 'scoped memory for tpu_custom_call.1']
    %8 = vsyncpa [#allocation3], 0
    // Predicated region
    $region2: #{tpu_custom_call.1} parent=1 // pred_check
      _
    $region3: #{tpu_custom_call.1} parent=1 // pred_check_branch
      %10 = sbr.rel (0) target = $region5
    $region4: #{tpu_custom_call.1} parent=1 // pred_region
      _
    $region5: #{tpu_custom_call.1} parent=1 // pred_fallthru
      _
    // Predicated region
    $region6: #{tpu_custom_call.1} parent=1 // pred_check
      _
    $region7: #{tpu_custom_call.1} parent=1 // pred_check_branch
      %12 = sbr.rel (0) target = $region9
    $region8: #{tpu_custom_call.1} parent=1 // pred_region
      _
    $region9: #{tpu_custom_call.1} parent=1 // pred_fallthru
      _
    // Predicated region
    $region10: #{tpu_custom_call.1} parent=1 // pred_check
      _
    $region11: #{tpu_custom_call.1} parent=1 // pred_check_branch
      %14 = sbr.rel (0) target = $region13
    $region12: #{tpu_custom_call.1} parent=1 // pred_region
      _
    $region13: #{tpu_custom_call.1} parent=1 // pred_fallthru
      _
    %v16 = vld [vmem:[%s2] sm:$0xf]
    %v17 = vld [vmem:[%s1] sm:$0xff]
    %v18 = vld [vmem:[%s1 + $0x8] sm:$0xff]
    %v19 = vld [vmem:[%s1 + $0x10] sm:$0xff]
    %v20 = vld [vmem:[%s1 + $0x18] sm:$0xff]
    %v21 = vld [vmem:[%s1 + $0x20] sm:$0xff]
    %v22 = vld [vmem:[%s1 + $0x28] sm:$0xff]
    %v23 = vld [vmem:[%s1 + $0x30] sm:$0xff]
    %v24 = vld [vmem:[%s1 + $0x38] sm:$0xff]
    %v25 = vld [vmem:[%s1 + $0x40] sm:$0xff]
    %v26 = vld [vmem:[%s1 + $0x48] sm:$0xff]
    %v27 = vld [vmem:[%s1 + $0x50] sm:$0xff]
    %v28 = vld [vmem:[%s1 + $0x58] sm:$0xff]
    %v29 = vld [vmem:[%s1 + $0x60] sm:$0xff]
    %v30 = vld [vmem:[%s1 + $0x68] sm:$0xff]
    %v31 = vld [vmem:[%s1 + $0x70] sm:$0xff]
    %v32 = vld [vmem:[%s1 + $0x78] sm:$0xff]
    %v33 = vld [vmem:[%s1 + $0x80] sm:$0xff]
    %v34 = vld [vmem:[%s1 + $0x88] sm:$0xff]
    %v35 = vld [vmem:[%s1 + $0x90] sm:$0xff]
    %v36 = vld [vmem:[%s1 + $0x98] sm:$0xff]
    %v37 = vld [vmem:[%s1 + $0xa0] sm:$0xff]
    %v38 = vld [vmem:[%s1 + $0xa8] sm:$0xff]
    %v39 = vld [vmem:[%s1 + $0xb0] sm:$0xff]
    %v40 = vld [vmem:[%s1 + $0xb8] sm:$0xff]
    %v41 = vld [vmem:[%s1 + $0xc0] sm:$0xff]
    %v42 = vld [vmem:[%s1 + $0xc8] sm:$0xff]
    %v43 = vld [vmem:[%s1 + $0xd0] sm:$0xff]
    %v44 = vld [vmem:[%s1 + $0xd8] sm:$0xff]
    %v45 = vld [vmem:[%s1 + $0xe0] sm:$0xff]
    %v46 = vld [vmem:[%s1 + $0xe8] sm:$0xff]
    %v47 = vld [vmem:[%s1 + $0xf0] sm:$0xff]
    %v48 = vld [vmem:[%s1 + $0xf8] sm:$0xff]
    %v49 = vpack.c.bf16 %v16, %v16
    %v50 = vpack.c.bf16 %v18, %v17
    %v51 = vpack.c.bf16 %v20, %v19
    %v52 = vpack.c.bf16 %v22, %v21
    %v53 = vpack.c.bf16 %v24, %v23
    %v54 = vpack.c.bf16 %v26, %v25
    %v55 = vpack.c.bf16 %v28, %v27
    %v56 = vpack.c.bf16 %v30, %v29
    %v57 = vpack.c.bf16 %v32, %v31
    %v58 = vpack.c.bf16 %v34, %v33
    %v59 = vpack.c.bf16 %v36, %v35
    %v60 = vpack.c.bf16 %v38, %v37
    %v61 = vpack.c.bf16 %v40, %v39
    %v62 = vpack.c.bf16 %v42, %v41
    %v63 = vpack.c.bf16 %v44, %v43
    %v64 = vpack.c.bf16 %v46, %v45
    %v65 = vpack.c.bf16 %v48, %v47
    %vm66 = vcmask 31744
    %v68 = vsel %vm66, %v50, 0
    %v71 = vsel %vm66, %v51, 0
    %v74 = vsel %vm66, %v52, 0
    %v77 = vsel %vm66, %v53, 0
    %v80 = vsel %vm66, %v54, 0
    %v83 = vsel %vm66, %v55, 0
    %v86 = vsel %vm66, %v56, 0
    %v89 = vsel %vm66, %v57, 0
    %v92 = vsel %vm66, %v58, 0
    %v95 = vsel %vm66, %v59, 0
    %v98 = vsel %vm66, %v60, 0
    %v101 = vsel %vm66, %v61, 0
    %v104 = vsel %vm66, %v62, 0
    %v107 = vsel %vm66, %v63, 0
    %v110 = vsel %vm66, %v64, 0
    %v113 = vsel %vm66, %v65, 0
    %vm115 = vcmask 1041408
    %v117 = vsel %vm115, %v49, 0
    %119 = vmatprep.subr.bf16.mxu0 0
    %120 = vmatpush1.bf16.msra.mxu0 0
    %121 = vmatprep.subr.bf16.mxu0 0
    %122 = vmatpush1.bf16.msra.mxu0 0
    %123 = vmatprep.subr.bf16.mxu0 0
    %124 = vmatpush1.bf16.msra.mxu0 0
    %125 = vmatprep.subr.bf16.mxu0 0
    %126 = vmatpush1.bf16.msra.mxu0 0
    %127 = vmatprep.subr.bf16.mxu0 0
    %128 = vmatpush1.bf16.msra.mxu0 0
    %129 = vmatprep.subr.bf16.mxu0 0
    %130 = vmatpush1.bf16.msra.mxu0 0
    %131 = vmatprep.subr.bf16.mxu0 0
    %132 = vmatpush1.bf16.msra.mxu0 0
    %133 = vmatprep.subr.bf16.mxu0 0
    %134 = vmatpush1.bf16.msra.mxu0 %v117
    %135 = vmatprep.subr.bf16.mxu0 0
    %136 = vmatpush2.bf16.msra.mxu0 0
    %137 = vmatprep.subr.bf16.mxu0 0
    %138 = vmatpush2.bf16.msra.mxu0 0
    %139 = vmatprep.subr.bf16.mxu0 0
    %140 = vmatpush2.bf16.msra.mxu0 0
    %141 = vmatprep.subr.bf16.mxu0 0
    %142 = vmatpush2.bf16.msra.mxu0 0
    %143 = vmatprep.subr.bf16.mxu0 0
    %144 = vmatpush2.bf16.msra.mxu0 0
    %145 = vmatprep.subr.bf16.mxu0 0
    %146 = vmatpush2.bf16.msra.mxu0 0
    %147 = vmatprep.subr.bf16.mxu0 0
    %148 = vmatpush2.bf16.msra.mxu0 0
    %149 = vmatprep.subr.bf16.mxu0 0
    %150 = vmatpush2.bf16.msra.mxu0 0
    %151 = vmatprep.mubr.bf16.mxu0 0
    %152 = vmatmul.mubr.bf16.gmra.mxu0 %v68
    %v153 = vpop.f32.mrf.mxu0
    %v154 = vadd.f32 0.0, %v153
    %v155 = vpop.f32.mrf.mxu0
    %v156 = vpop.f32.mrf.mxu0
    %v157 = vadd.f32 0.0, %v156
    %v158 = vpop.f32.mrf.mxu0
    %159 = vmatprep.mubr.bf16.mxu0 0
    %160 = vmatmul.mubr.bf16.gmra.mxu0 %v71
    %v161 = vpop.f32.mrf.mxu0
    %v162 = vadd.f32 0.0, %v161
    %v163 = vpop.f32.mrf.mxu0
    %v164 = vpop.f32.mrf.mxu0
    %v165 = vadd.f32 0.0, %v164
    %v166 = vpop.f32.mrf.mxu0
    %167 = vmatprep.mubr.bf16.mxu0 0
    %168 = vmatmul.mubr.bf16.gmra.mxu0 %v74
    %v169 = vpop.f32.mrf.mxu0
    %v170 = vadd.f32 0.0, %v169
    %v171 = vpop.f32.mrf.mxu0
    %v172 = vpop.f32.mrf.mxu0
    %v173 = vadd.f32 0.0, %v172
    %v174 = vpop.f32.mrf.mxu0
    %175 = vmatprep.mubr.bf16.mxu0 0
    %176 = vmatmul.mubr.bf16.gmra.mxu0 %v77
    %v177 = vpop.f32.mrf.mxu0
    %v178 = vadd.f32 0.0, %v177
    %v179 = vpop.f32.mrf.mxu0
    %v180 = vpop.f32.mrf.mxu0
    %v181 = vadd.f32 0.0, %v180
    %v182 = vpop.f32.mrf.mxu0
    %183 = vmatprep.mubr.bf16.mxu0 0
    %184 = vmatmul.mubr.bf16.gmra.mxu0 %v80
    %v185 = vpop.f32.mrf.mxu0
    %v186 = vadd.f32 0.0, %v185
    %v187 = vpop.f32.mrf.mxu0
    %v188 = vpop.f32.mrf.mxu0
    %v189 = vadd.f32 0.0, %v188
    %v190 = vpop.f32.mrf.mxu0
    %191 = vmatprep.mubr.bf16.mxu0 0
    %192 = vmatmul.mubr.bf16.gmra.mxu0 %v83
    %v193 = vpop.f32.mrf.mxu0
    %v194 = vadd.f32 0.0, %v193
    %v195 = vpop.f32.mrf.mxu0
    %v196 = vpop.f32.mrf.mxu0
    %v197 = vadd.f32 0.0, %v196
    %v198 = vpop.f32.mrf.mxu0
    %199 = vmatprep.mubr.bf16.mxu0 0
    %200 = vmatmul.mubr.bf16.gmra.mxu0 %v86
    %v201 = vpop.f32.mrf.mxu0
    %v202 = vadd.f32 0.0, %v201
    %v203 = vpop.f32.mrf.mxu0
    %v204 = vpop.f32.mrf.mxu0
    %v205 = vadd.f32 0.0, %v204
    %v206 = vpop.f32.mrf.mxu0
    %207 = vmatprep.mubr.bf16.mxu0 0
    %208 = vmatmul.mubr.bf16.gmra.mxu0 %v89
    %v209 = vpop.f32.mrf.mxu0
    %v210 = vadd.f32 0.0, %v209
    %v211 = vpop.f32.mrf.mxu0
    %v212 = vpop.f32.mrf.mxu0
    %v213 = vadd.f32 0.0, %v212
    %v214 = vpop.f32.mrf.mxu0
    %215 = vmatprep.mubr.bf16.mxu0 0
    %216 = vmatmul.mubr.bf16.gmra.mxu0 %v92
    %v217 = vpop.f32.mrf.mxu0
    %v218 = vadd.f32 0.0, %v217
    %v219 = vpop.f32.mrf.mxu0
    %v220 = vpop.f32.mrf.mxu0
    %v221 = vadd.f32 0.0, %v220
    %v222 = vpop.f32.mrf.mxu0
    %223 = vmatprep.mubr.bf16.mxu0 0
    %224 = vmatmul.mubr.bf16.gmra.mxu0 %v95
    %v225 = vpop.f32.mrf.mxu0
    %v226 = vadd.f32 0.0, %v225
    %v227 = vpop.f32.mrf.mxu0
    %v228 = vpop.f32.mrf.mxu0
    %v229 = vadd.f32 0.0, %v228
    %v230 = vpop.f32.mrf.mxu0
    %231 = vmatprep.mubr.bf16.mxu0 0
    %232 = vmatmul.mubr.bf16.gmra.mxu0 %v98
    %v233 = vpop.f32.mrf.mxu0
    %v234 = vadd.f32 0.0, %v233
    %v235 = vpop.f32.mrf.mxu0
    %v236 = vpop.f32.mrf.mxu0
    %v237 = vadd.f32 0.0, %v236
    %v238 = vpop.f32.mrf.mxu0
    %239 = vmatprep.mubr.bf16.mxu0 0
    %240 = vmatmul.mubr.bf16.gmra.mxu0 %v101
    %v241 = vpop.f32.mrf.mxu0
    %v242 = vadd.f32 0.0, %v241
    %v243 = vpop.f32.mrf.mxu0
    %v244 = vpop.f32.mrf.mxu0
    %v245 = vadd.f32 0.0, %v244
    %v246 = vpop.f32.mrf.mxu0
    %247 = vmatprep.mubr.bf16.mxu0 0
    %248 = vmatmul.mubr.bf16.gmra.mxu0 %v104
    %v249 = vpop.f32.mrf.mxu0
    %v250 = vadd.f32 0.0, %v249
    %v251 = vpop.f32.mrf.mxu0
    %v252 = vpop.f32.mrf.mxu0
    %v253 = vadd.f32 0.0, %v252
    %v254 = vpop.f32.mrf.mxu0
    %255 = vmatprep.mubr.bf16.mxu0 0
    %256 = vmatmul.mubr.bf16.gmra.mxu0 %v107
    %v257 = vpop.f32.mrf.mxu0
    %v258 = vadd.f32 0.0, %v257
    %v259 = vpop.f32.mrf.mxu0
    %v260 = vpop.f32.mrf.mxu0
    %v261 = vadd.f32 0.0, %v260
    %v262 = vpop.f32.mrf.mxu0
    %263 = vmatprep.mubr.bf16.mxu0 0
    %264 = vmatmul.mubr.bf16.gmra.mxu0 %v110
    %v265 = vpop.f32.mrf.mxu0
    %v266 = vadd.f32 0.0, %v265
    %v267 = vpop.f32.mrf.mxu0
    %v268 = vpop.f32.mrf.mxu0
    %v269 = vadd.f32 0.0, %v268
    %v270 = vpop.f32.mrf.mxu0
    %271 = vmatprep.mubr.bf16.mxu0 0
    %272 = vmatmul.mubr.bf16.gmra.mxu0 %v113
    %v273 = vpop.f32.mrf.mxu0
    %v274 = vadd.f32 0.0, %v273
    %v275 = vpop.f32.mrf.mxu0
    %v276 = vpop.f32.mrf.mxu0
    %v277 = vadd.f32 0.0, %v276
    %v278 = vpop.f32.mrf.mxu0
    %279 = vdwg.mxu0
    %v280 = vld [vmem:[%s0] sm:$0xff]
    %v281 = vld [vmem:[%s0 + $0x8] sm:$0xff]
    %v282 = vld [vmem:[%s0 + $0x10] sm:$0xff]
    %v283 = vld [vmem:[%s0 + $0x18] sm:$0xff]
    %v284 = vld [vmem:[%s0 + $0x20] sm:$0xff]
    %v285 = vld [vmem:[%s0 + $0x28] sm:$0xff]
    %v286 = vld [vmem:[%s0 + $0x30] sm:$0xff]
    %v287 = vld [vmem:[%s0 + $0x38] sm:$0xff]
    %v288 = vld [vmem:[%s0 + $0x40] sm:$0xff]
    %v289 = vld [vmem:[%s0 + $0x48] sm:$0xff]
    %v290 = vld [vmem:[%s0 + $0x50] sm:$0xff]
    %v291 = vld [vmem:[%s0 + $0x58] sm:$0xff]
    %v292 = vld [vmem:[%s0 + $0x60] sm:$0xff]
    %v293 = vld [vmem:[%s0 + $0x68] sm:$0xff]
    %v294 = vld [vmem:[%s0 + $0x70] sm:$0xff]
    %v295 = vld [vmem:[%s0 + $0x78] sm:$0xff]
    %v296 = vld [vmem:[%s0 + $0x80] sm:$0xff]
    %v297 = vld [vmem:[%s0 + $0x88] sm:$0xff]
    %v298 = vld [vmem:[%s0 + $0x90] sm:$0xff]
    %v299 = vld [vmem:[%s0 + $0x98] sm:$0xff]
    %v300 = vld [vmem:[%s0 + $0xa0] sm:$0xff]
    %v301 = vld [vmem:[%s0 + $0xa8] sm:$0xff]
    %v302 = vld [vmem:[%s0 + $0xb0] sm:$0xff]
    %v303 = vld [vmem:[%s0 + $0xb8] sm:$0xff]
    %v304 = vld [vmem:[%s0 + $0xc0] sm:$0xff]
    %v305 = vld [vmem:[%s0 + $0xc8] sm:$0xff]
    %v306 = vld [vmem:[%s0 + $0xd0] sm:$0xff]
    %v307 = vld [vmem:[%s0 + $0xd8] sm:$0xff]
    %v308 = vld [vmem:[%s0 + $0xe0] sm:$0xff]
    %v309 = vld [vmem:[%s0 + $0xe8] sm:$0xff]
    %v310 = vld [vmem:[%s0 + $0xf0] sm:$0xff]
    %v311 = vld [vmem:[%s0 + $0xf8] sm:$0xff]
    %v312 = vadd.f32 %v280, %v154
    %v313 = vadd.f32 %v281, %v157
    %v314 = vadd.f32 %v282, %v162
    %v315 = vadd.f32 %v283, %v165
    %v316 = vadd.f32 %v284, %v170
    %v317 = vadd.f32 %v285, %v173
    %v318 = vadd.f32 %v286, %v178
    %v319 = vadd.f32 %v287, %v181
    %v320 = vadd.f32 %v288, %v186
    %v321 = vadd.f32 %v289, %v189
    %v322 = vadd.f32 %v290, %v194
    %v323 = vadd.f32 %v291, %v197
    %v324 = vadd.f32 %v292, %v202
    %v325 = vadd.f32 %v293, %v205
    %v326 = vadd.f32 %v294, %v210
    %v327 = vadd.f32 %v295, %v213
    %v328 = vadd.f32 %v296, %v218
    %v329 = vadd.f32 %v297, %v221
    %v330 = vadd.f32 %v298, %v226
    %v331 = vadd.f32 %v299, %v229
    %v332 = vadd.f32 %v300, %v234
    %v333 = vadd.f32 %v301, %v237
    %v334 = vadd.f32 %v302, %v242
    %v335 = vadd.f32 %v303, %v245
    %v336 = vadd.f32 %v304, %v250
    %v337 = vadd.f32 %v305, %v253
    %v338 = vadd.f32 %v306, %v258
    %v339 = vadd.f32 %v307, %v261
    %v340 = vadd.f32 %v308, %v266
    %v341 = vadd.f32 %v309, %v269
    %v342 = vadd.f32 %v310, %v274
    %v343 = vadd.f32 %v311, %v277
    %344 = vst [vmem:[#allocation2] sm:$0xff] %v312
    %345 = vst [vmem:[#allocation2 + $0x8] sm:$0xff] %v313
    %346 = vst [vmem:[#allocation2 + $0x10] sm:$0xff] %v314
    %347 = vst [vmem:[#allocation2 + $0x18] sm:$0xff] %v315
    %348 = vst [vmem:[#allocation2 + $0x20] sm:$0xff] %v316
    %349 = vst [vmem:[#allocation2 + $0x28] sm:$0xff] %v317
    %350 = vst [vmem:[#allocation2 + $0x30] sm:$0xff] %v318
    %351 = vst [vmem:[#allocation2 + $0x38] sm:$0xff] %v319
    %352 = vst [vmem:[#allocation2 + $0x40] sm:$0xff] %v320
    %353 = vst [vmem:[#allocation2 + $0x48] sm:$0xff] %v321
    %354 = vst [vmem:[#allocation2 + $0x50] sm:$0xff] %v322
    %355 = vst [vmem:[#allocation2 + $0x58] sm:$0xff] %v323
    %356 = vst [vmem:[#allocation2 + $0x60] sm:$0xff] %v324
    %357 = vst [vmem:[#allocation2 + $0x68] sm:$0xff] %v325
    %358 = vst [vmem:[#allocation2 + $0x70] sm:$0xff] %v326
    %359 = vst [vmem:[#allocation2 + $0x78] sm:$0xff] %v327
    %360 = vst [vmem:[#allocation2 + $0x80] sm:$0xff] %v328
    %361 = vst [vmem:[#allocation2 + $0x88] sm:$0xff] %v329
    %362 = vst [vmem:[#allocation2 + $0x90] sm:$0xff] %v330
    %363 = vst [vmem:[#allocation2 + $0x98] sm:$0xff] %v331
    %364 = vst [vmem:[#allocation2 + $0xa0] sm:$0xff] %v332
    %365 = vst [vmem:[#allocation2 + $0xa8] sm:$0xff] %v333
    %366 = vst [vmem:[#allocation2 + $0xb0] sm:$0xff] %v334
    %367 = vst [vmem:[#allocation2 + $0xb8] sm:$0xff] %v335
    %368 = vst [vmem:[#allocation2 + $0xc0] sm:$0xff] %v336
    %369 = vst [vmem:[#allocation2 + $0xc8] sm:$0xff] %v337
    %370 = vst [vmem:[#allocation2 + $0xd0] sm:$0xff] %v338
    %371 = vst [vmem:[#allocation2 + $0xd8] sm:$0xff] %v339
    %372 = vst [vmem:[#allocation2 + $0xe0] sm:$0xff] %v340
    %373 = vst [vmem:[#allocation2 + $0xe8] sm:$0xff] %v341
    %374 = vst [vmem:[#allocation2 + $0xf0] sm:$0xff] %v342
    %375 = vst [vmem:[#allocation2 + $0xf8] sm:$0xff] %v343
    // Predicated region
    $region14: #{tpu_custom_call.1} parent=1 // pred_check
      _
    $region15: #{tpu_custom_call.1} parent=1 // pred_check_branch
      %377 = sbr.rel (0) target = $region17
    $region16: #{tpu_custom_call.1} parent=1 // pred_region
      %s379 = ssub.s32 4096, 4096
      %380 = vsyncadd [#allocation3], %s379
      %s381 = sshll.u32 [#allocation2], 4
      %s382 = int_to_ptr.vmem [resolvable:$true] %s381
      %387 = dma.vmem_to_hbm [thread:$0]  %s382, 4096, %s3, [#allocation3], 128, 128, 8
    $region17: #{tpu_custom_call.1} parent=1 // pred_fallthru
      _
    // Predicated region
    $region18: #{tpu_custom_call.1} parent=1 // pred_check
      _
    $region19: #{tpu_custom_call.1} parent=1 // pred_check_branch
      %389 = sbr.rel (0) target = $region21
    $region20: #{tpu_custom_call.1} parent=1 // pred_region
      %390 = dma.done [#allocation3], 4096
    $region21: #{tpu_custom_call.1} parent=1 // pred_fallthru
      _
    %391 = vsyncpa [#allocation3], 1

</llo_original>
